<compile_context>
chip_gen: v7x
topology: tpu7x:2x2x1
jax: 0.10.0
libtpu: 0.0.40
codegen_flags: <defaults>
</compile_context>

<pallas_src>
import functools

import jax
import jax.numpy as jnp
from jax.experimental import pallas as pl
from jax.experimental.pallas import tpu as pltpu

LN_EPS = 1e-5                       # PyTorch nn.LayerNorm default
VMEM_LIMIT_BYTES = 48 * 1024 * 1024  # headroom under v7x's 64 MiB physical VMEM


def _round_up(x, m):
    return ((x + m - 1) // m) * m


def _pick_tile(dim, pref):
    """Largest multiple of 128 <= pref that divides dim; else the full dim."""
    if dim <= pref:
        return dim
    t = (pref // 128) * 128
    while t >= 128:
        if dim % t == 0:
            return t
        t -= 128
    return dim


def _layernorm(v, g, b):
    mu = jnp.mean(v, axis=-1, keepdims=True)
    var = jnp.mean((v - mu) ** 2, axis=-1, keepdims=True)
    return (v - mu) * jax.lax.rsqrt(var + LN_EPS) * g + b


def _gelu_exact(z):
    # nn.GELU() default: 0.5 * z * (1 + erf(z / sqrt(2)))
    return 0.5 * z * (1.0 + jax.lax.erf(z / 1.4142135623730951))


# ---------------- Pallas kernels ----------------

def block_prologue_kernel(x_ref, g1_ref, be1_ref, g2_ref, be2_ref,
                          h_ref, n_ref):
    """Per-block prologue: h = x + LN1(x) (f32 residual), n = LN2(h) (bf16)."""
    x = x_ref[...]
    h = x + _layernorm(x, g1_ref[...], be1_ref[...])
    h_ref[...] = h
    n_ref[...] = _layernorm(h, g2_ref[...], be2_ref[...]).astype(n_ref.dtype)


def matmul_bias_gelu_kernel(a_ref, w_ref, b_ref, o_ref, acc_ref):
    """o = GELU(a @ W + b), K-tiled with f32 VMEM accumulator, bf16 output."""
    k = pl.program_id(2)

    @pl.when(k == 0)
    def _():
        acc_ref[...] = jnp.zeros_like(acc_ref)

    acc_ref[...] += jnp.dot(a_ref[...], w_ref[...],
                            preferred_element_type=jnp.float32)

    @pl.when(k == pl.num_programs(2) - 1)
    def _():
        z = acc_ref[...] + b_ref[...]
        o_ref[...] = _gelu_exact(z).astype(o_ref.dtype)


def matmul_bias_residual_kernel(a_ref, w_ref, b_ref, r_ref, o_ref, acc_ref):
    """o = r + a @ W + b, K-tiled with f32 VMEM accumulator, f32 output."""
    k = pl.program_id(2)

    @pl.when(k == 0)
    def _():
        acc_ref[...] = jnp.zeros_like(acc_ref)

    acc_ref[...] += jnp.dot(a_ref[...], w_ref[...],
                            preferred_element_type=jnp.float32)

    @pl.when(k == pl.num_programs(2) - 1)
    def _():
        o_ref[...] = (acc_ref[...] + b_ref[...] + r_ref[...]).astype(o_ref.dtype)


def final_ln_kernel(x_ref, g_ref, be_ref, o_ref):
    """Final LayerNorm, output in bf16 for the lm_head matmul."""
    o_ref[...] = _layernorm(x_ref[...], g_ref[...], be_ref[...]).astype(o_ref.dtype)


def head_matmul_kernel(n_ref, w_ref, o_ref):
    """Tied lm_head (no bias): logits tile = n @ W_tile, vocab-tiled."""
    o_ref[...] = jnp.dot(n_ref[...], w_ref[...],
                         preferred_element_type=jnp.float32)


# ---------------- Wrappers ----------------

def run_block_prologue(x, g1, be1, g2, be2, *, tm):
    M, H = x.shape
    return pl.pallas_call(
        block_prologue_kernel,
        out_shape=(jax.ShapeDtypeStruct((M, H), jnp.float32),
                   jax.ShapeDtypeStruct((M, H), jnp.bfloat16)),
        grid=(M // tm,),
        in_specs=[
            pl.BlockSpec((tm, H), lambda i: (i, 0)),
            pl.BlockSpec((1, H), lambda i: (0, 0)),
            pl.BlockSpec((1, H), lambda i: (0, 0)),
            pl.BlockSpec((1, H), lambda i: (0, 0)),
            pl.BlockSpec((1, H), lambda i: (0, 0)),
        ],
        out_specs=(pl.BlockSpec((tm, H), lambda i: (i, 0)),
                   pl.BlockSpec((tm, H), lambda i: (i, 0))),
        compiler_params=pltpu.CompilerParams(
            dimension_semantics=("parallel",),
            vmem_limit_bytes=VMEM_LIMIT_BYTES),
    )(x, g1, be1, g2, be2)


def run_matmul_gelu(a, w, b, *, tm, tn=512, tk=512):
    M, K = a.shape
    _, N = w.shape
    tn_e = _pick_tile(N, tn)
    tk_e = _pick_tile(K, tk)
    return pl.pallas_call(
        matmul_bias_gelu_kernel,
        out_shape=jax.ShapeDtypeStruct((M, N), jnp.bfloat16),
        grid=(M // tm, N // tn_e, K // tk_e),
        in_specs=[
            pl.BlockSpec((tm, tk_e), lambda i, j, k: (i, k)),
            pl.BlockSpec((tk_e, tn_e), lambda i, j, k: (k, j)),
            pl.BlockSpec((1, tn_e), lambda i, j, k: (0, j)),
        ],
        out_specs=pl.BlockSpec((tm, tn_e), lambda i, j, k: (i, j)),
        scratch_shapes=[pltpu.VMEM((tm, tn_e), jnp.float32)],
        compiler_params=pltpu.CompilerParams(
            dimension_semantics=("parallel", "parallel", "arbitrary"),
            vmem_limit_bytes=VMEM_LIMIT_BYTES),
    )(a, w, b)


def run_matmul_residual(a, w, b, r, *, tm, tn=512, tk=512):
    M, K = a.shape
    _, N = w.shape
    tn_e = _pick_tile(N, tn)
    tk_e = _pick_tile(K, tk)
    return pl.pallas_call(
        matmul_bias_residual_kernel,
        out_shape=jax.ShapeDtypeStruct((M, N), jnp.float32),
        grid=(M // tm, N // tn_e, K // tk_e),
        in_specs=[
            pl.BlockSpec((tm, tk_e), lambda i, j, k: (i, k)),
            pl.BlockSpec((tk_e, tn_e), lambda i, j, k: (k, j)),
            pl.BlockSpec((1, tn_e), lambda i, j, k: (0, j)),
            pl.BlockSpec((tm, tn_e), lambda i, j, k: (i, j)),
        ],
        out_specs=pl.BlockSpec((tm, tn_e), lambda i, j, k: (i, j)),
        scratch_shapes=[pltpu.VMEM((tm, tn_e), jnp.float32)],
        compiler_params=pltpu.CompilerParams(
            dimension_semantics=("parallel", "parallel", "arbitrary"),
            vmem_limit_bytes=VMEM_LIMIT_BYTES),
    )(a, w, b, r)


def run_final_ln(x, g, be, *, tm):
    M, H = x.shape
    return pl.pallas_call(
        final_ln_kernel,
        out_shape=jax.ShapeDtypeStruct((M, H), jnp.bfloat16),
        grid=(M // tm,),
        in_specs=[
            pl.BlockSpec((tm, H), lambda i: (i, 0)),
            pl.BlockSpec((1, H), lambda i: (0, 0)),
            pl.BlockSpec((1, H), lambda i: (0, 0)),
        ],
        out_specs=pl.BlockSpec((tm, H), lambda i: (i, 0)),
        compiler_params=pltpu.CompilerParams(
            dimension_semantics=("parallel",),
            vmem_limit_bytes=VMEM_LIMIT_BYTES),
    )(x, g, be)


def run_head(n, w_lm, *, tm, tv=1024):
    M, H = n.shape
    _, V = w_lm.shape
    tv_e = _pick_tile(V, tv)
    return pl.pallas_call(
        head_matmul_kernel,
        out_shape=jax.ShapeDtypeStruct((M, V), jnp.float32),
        grid=(M // tm, V // tv_e),
        in_specs=[
            pl.BlockSpec((tm, H), lambda i, j: (i, 0)),
            pl.BlockSpec((H, tv_e), lambda i, j: (0, j)),
        ],
        out_specs=pl.BlockSpec((tm, tv_e), lambda i, j: (i, j)),
        compiler_params=pltpu.CompilerParams(
            dimension_semantics=("parallel", "parallel"),
            vmem_limit_bytes=VMEM_LIMIT_BYTES),
    )(n, w_lm)


def llama_forward(idx, params, *, tm=256, tn=512, tk=512, tv=1024):
    """idx: int32 [B, S] token ids. Returns logits [B, S, vocab] (loss=None path).

    tm: row tile (default 256 for v6e/v7x; use 128 on v5e).
    tn/tk: MLP out-col / reduction tiles. tv: lm_head vocab tile.
    """
    B, S = idx.shape
    tok_emb = params["token_embd"]            # [vocab, H] f32 (embedding gather)
    pos_emb = params["pos_embd"]              # [max_seq, H] f32
    H = tok_emb.shape[1]

    # glue: embedding gathers + positional add (plain JAX)
    x = tok_emb[idx] + pos_emb[:S][None, :, :]          # [B, S, H]
    x = x.reshape(B * S, H).astype(jnp.float32)

    # pad the token rows once so the row grid has no dropped tail
    M = B * S
    tm_eff = min(tm, _round_up(M, 16))
    M_pad = _round_up(M, tm_eff)
    if M_pad != M:
        x = jnp.pad(x, ((0, M_pad - M), (0, 0)))

    for lp in params["layers"]:
        h, n = run_block_prologue(x, lp["ln1_g"], lp["ln1_b"],
                                  lp["ln2_g"], lp["ln2_b"], tm=tm_eff)
        z = run_matmul_gelu(n, lp["w1"], lp["b1"], tm=tm_eff, tn=tn, tk=tk)
        x = run_matmul_residual(z, lp["w2"], lp["b2"], h, tm=tm_eff, tn=tn, tk=tk)

    nf = run_final_ln(x, params["lnf_g"], params["lnf_b"], tm=tm_eff)
    logits = run_head(nf, params["lm_head_w"], tm=tm_eff, tv=tv)   # pre-transposed
    logits = logits[:M]
    return logits.reshape(B, S, -1)


# ---------------- Plain-JAX reference (same semantics, same bf16 weights) ----------------

def llama_reference(idx, params):
    B, S = idx.shape
    x = (params["token_embd"][idx] + params["pos_embd"][:S][None]).astype(jnp.float32)
    for lp in params["layers"]:
        h = x + _layernorm(x, lp["ln1_g"], lp["ln1_b"])
        n = _layernorm(h, lp["ln2_g"], lp["ln2_b"])
        z = _gelu_exact(n @ lp["w1"].astype(jnp.float32) + lp["b1"])
        x = h + (z @ lp["w2"].astype(jnp.float32) + lp["b2"])
    n = _layernorm(x, params["lnf_g"], params["lnf_b"])
    return (n @ params["lm_head_w"].astype(jnp.float32)).reshape(B, S, -1)


# ---------------- Parameter init ----------------

def make_params(key, vocab, H, max_seq, n_layer):
    keys = jax.random.split(key, 2 + 2 * n_layer)
    token_embd = 0.02 * jax.random.normal(keys[0], (vocab, H), jnp.float32)
    params = {
        "token_embd": token_embd,                                   # [V, H] f32 (gather)
        "lm_head_w": token_embd.T.astype(jnp.bfloat16),             # [H, V] tied, pre-transposed once
        "pos_embd": 0.02 * jax.random.normal(keys[1], (max_seq, H), jnp.float32),
        "lnf_g": jnp.ones((1, H), jnp.float32),
        "lnf_b": jnp.zeros((1, H), jnp.float32),
        "layers": [],
    }
    for l in range(n_layer):
        k1, k2 = keys[2 + 2 * l], keys[3 + 2 * l]
        params["layers"].append({
            "ln1_g": jnp.ones((1, H), jnp.float32),
            "ln1_b": jnp.zeros((1, H), jnp.float32),
            "ln2_g": jnp.ones((1, H), jnp.float32),
            "ln2_b": jnp.zeros((1, H), jnp.float32),
            "w1": (0.02 * jax.random.normal(k1, (H, 4 * H), jnp.float32)).astype(jnp.bfloat16),
            "b1": jnp.zeros((1, 4 * H), jnp.float32),
            "w2": (0.02 * jax.random.normal(k2, (4 * H, H), jnp.float32)).astype(jnp.bfloat16),
            "b2": jnp.zeros((1, H), jnp.float32),
        })
    # TODO(synk): per-head attention (key/query/value/proj) params are dead code in
    # the PyTorch forward (their outputs are discarded), so they are intentionally omitted.
    return params


if __name__ == "__main__":
    # small, lane-dense config: vocab=256, hidden=128 (multiples of 128),
    # max_seq=16, n_layer=2, batch=2, seq=8
    VOCAB, HIDDEN, MAX_SEQ, N_LAYER = 256, 128, 16, 2
    B, S = 2, 8

    key = jax.random.PRNGKey(0)
    k_param, k_idx = jax.random.split(key)
    params = make_params(k_param, VOCAB, HIDDEN, MAX_SEQ, N_LAYER)
    idx = jax.random.randint(k_idx, (B, S), 0, VOCAB, dtype=jnp.int32)

    logits = llama_forward(idx, params)
    logits = jax.block_until_ready(logits)

    ref = llama_reference(idx, params)
    assert logits.shape == (B, S, VOCAB), logits.shape
    # bf16 matmul inputs in the kernels vs f32-activation reference -> loose-ish tol
    assert jnp.allclose(logits, ref, atol=2e-2, rtol=2e-2), (
        "mismatch vs reference: max abs err = %e"
        % float(jnp.max(jnp.abs(logits - ref))))

    print("KERNEL_OK")
</pallas_src>

<mosaic_0001>
module attributes {stable_mosaic.version = 11 : i64} {
  func.func @block_prologue_kernel(%arg0: i32, %arg1: memref<16x128xf32, #tpu.memory_space<vmem>>, %arg2: memref<1x128xf32, #tpu.memory_space<vmem>>, %arg3: memref<1x128xf32, #tpu.memory_space<vmem>>, %arg4: memref<1x128xf32, #tpu.memory_space<vmem>>, %arg5: memref<1x128xf32, #tpu.memory_space<vmem>>, %arg6: memref<16x128xf32, #tpu.memory_space<vmem>>, %arg7: memref<16x128xbf16, #tpu.memory_space<vmem>>) attributes {dimension_semantics = [#tpu.dimension_semantics<parallel>], iteration_bounds = array<i64: 1>, scalar_prefetch = 0 : i64, scratch_operands = 0 : i64, tpu.core_type = #tpu.core_type<tc>, window_params = [{transform_indices = @transform_0, window_bounds = array<i64: 16, 128>}, {pipeline_mode = #tpu.pipeline_mode<synchronous>, transform_indices = @transform_1, window_bounds = array<i64: 1, 128>}, {pipeline_mode = #tpu.pipeline_mode<synchronous>, transform_indices = @transform_2, window_bounds = array<i64: 1, 128>}, {pipeline_mode = #tpu.pipeline_mode<synchronous>, transform_indices = @transform_3, window_bounds = array<i64: 1, 128>}, {pipeline_mode = #tpu.pipeline_mode<synchronous>, transform_indices = @transform_4, window_bounds = array<i64: 1, 128>}, {transform_indices = @transform_5, window_bounds = array<i64: 16, 128>}, {transform_indices = @transform_6, window_bounds = array<i64: 16, 128>}]} {
    %c0 = arith.constant 0 : index
    %c0_0 = arith.constant 0 : index
    %0 = vector.load %arg1[%c0, %c0_0] : memref<16x128xf32, #tpu.memory_space<vmem>>, vector<16x128xf32>
    %c0_1 = arith.constant 0 : index
    %c0_2 = arith.constant 0 : index
    %1 = vector.load %arg2[%c0_1, %c0_2] : memref<1x128xf32, #tpu.memory_space<vmem>>, vector<1x128xf32>
    %c0_3 = arith.constant 0 : index
    %c0_4 = arith.constant 0 : index
    %2 = vector.load %arg3[%c0_3, %c0_4] : memref<1x128xf32, #tpu.memory_space<vmem>>, vector<1x128xf32>
    %cst = arith.constant dense<0.000000e+00> : vector<16xf32>
    %3 = vector.multi_reduction <add>, %0, %cst [1] : vector<16x128xf32> to vector<16xf32>
    %4 = vector.shape_cast %3 : vector<16xf32> to vector<16x1xf32>
    %cst_5 = arith.constant 1.280000e+02 : f32
    %5 = vector.broadcast %cst_5 : f32 to vector<16x1xf32>
    %6 = arith.divf %4, %5 : vector<16x1xf32>
    %7 = vector.broadcast %6 : vector<16x1xf32> to vector<16x128xf32>
    %8 = arith.subf %0, %7 : vector<16x128xf32>
    %9 = arith.mulf %8, %8 : vector<16x128xf32>
    %cst_6 = arith.constant dense<0.000000e+00> : vector<16xf32>
    %10 = vector.multi_reduction <add>, %9, %cst_6 [1] : vector<16x128xf32> to vector<16xf32>
    %11 = vector.shape_cast %10 : vector<16xf32> to vector<16x1xf32>
    %cst_7 = arith.constant 1.280000e+02 : f32
    %12 = vector.broadcast %cst_7 : f32 to vector<16x1xf32>
    %13 = arith.divf %11, %12 : vector<16x1xf32>
    %14 = vector.broadcast %6 : vector<16x1xf32> to vector<16x128xf32>
    %15 = arith.subf %0, %14 : vector<16x128xf32>
    %cst_8 = arith.constant 9.99999974E-6 : f32
    %16 = vector.broadcast %cst_8 : f32 to vector<16x1xf32>
    %17 = arith.addf %13, %16 : vector<16x1xf32>
    %18 = math.rsqrt %17 : vector<16x1xf32>
    %19 = vector.broadcast %18 : vector<16x1xf32> to vector<16x128xf32>
    %20 = arith.mulf %15, %19 : vector<16x128xf32>
    %21 = vector.broadcast %1 : vector<1x128xf32> to vector<16x128xf32>
    %22 = arith.mulf %20, %21 : vector<16x128xf32>
    %23 = vector.broadcast %2 : vector<1x128xf32> to vector<16x128xf32>
    %24 = arith.addf %22, %23 : vector<16x128xf32>
    %25 = arith.addf %0, %24 : vector<16x128xf32>
    %c0_9 = arith.constant 0 : index
    %c0_10 = arith.constant 0 : index
    %26 = vector.load %arg6[%c0_9, %c0_10] : memref<16x128xf32, #tpu.memory_space<vmem>>, vector<16x128xf32>
    tpu.vector_store %arg6[%c0_9, %c0_10], %25 {strides = array<i32>} : memref<16x128xf32, #tpu.memory_space<vmem>>, vector<16x128xf32>,
    %c0_11 = arith.constant 0 : index
    %c0_12 = arith.constant 0 : index
    %27 = vector.load %arg4[%c0_11, %c0_12] : memref<1x128xf32, #tpu.memory_space<vmem>>, vector<1x128xf32>
    %c0_13 = arith.constant 0 : index
    %c0_14 = arith.constant 0 : index
    %28 = vector.load %arg5[%c0_13, %c0_14] : memref<1x128xf32, #tpu.memory_space<vmem>>, vector<1x128xf32>
    %cst_15 = arith.constant dense<0.000000e+00> : vector<16xf32>
    %29 = vector.multi_reduction <add>, %25, %cst_15 [1] : vector<16x128xf32> to vector<16xf32>
    %30 = vector.shape_cast %29 : vector<16xf32> to vector<16x1xf32>
    %cst_16 = arith.constant 1.280000e+02 : f32
    %31 = vector.broadcast %cst_16 : f32 to vector<16x1xf32>
    %32 = arith.divf %30, %31 : vector<16x1xf32>
    %33 = vector.broadcast %32 : vector<16x1xf32> to vector<16x128xf32>
    %34 = arith.subf %25, %33 : vector<16x128xf32>
    %35 = arith.mulf %34, %34 : vector<16x128xf32>
    %cst_17 = arith.constant dense<0.000000e+00> : vector<16xf32>
    %36 = vector.multi_reduction <add>, %35, %cst_17 [1] : vector<16x128xf32> to vector<16xf32>
    %37 = vector.shape_cast %36 : vector<16xf32> to vector<16x1xf32>
    %cst_18 = arith.constant 1.280000e+02 : f32
    %38 = vector.broadcast %cst_18 : f32 to vector<16x1xf32>
    %39 = arith.divf %37, %38 : vector<16x1xf32>
    %40 = vector.broadcast %32 : vector<16x1xf32> to vector<16x128xf32>
    %41 = arith.subf %25, %40 : vector<16x128xf32>
    %cst_19 = arith.constant 9.99999974E-6 : f32
    %42 = vector.broadcast %cst_19 : f32 to vector<16x1xf32>
    %43 = arith.addf %39, %42 : vector<16x1xf32>
    %44 = math.rsqrt %43 : vector<16x1xf32>
    %45 = vector.broadcast %44 : vector<16x1xf32> to vector<16x128xf32>
    %46 = arith.mulf %41, %45 : vector<16x128xf32>
    %47 = vector.broadcast %27 : vector<1x128xf32> to vector<16x128xf32>
    %48 = arith.mulf %46, %47 : vector<16x128xf32>
    %49 = vector.broadcast %28 : vector<1x128xf32> to vector<16x128xf32>
    %50 = arith.addf %48, %49 : vector<16x128xf32>
    %51 = arith.truncf %50 : vector<16x128xf32> to vector<16x128xbf16>
    %c0_20 = arith.constant 0 : index
    %c0_21 = arith.constant 0 : index
    %52 = vector.load %arg7[%c0_20, %c0_21] : memref<16x128xbf16, #tpu.memory_space<vmem>>, vector<16x128xbf16>
    tpu.vector_store %arg7[%c0_20, %c0_21], %51 {strides = array<i32>} : memref<16x128xbf16, #tpu.memory_space<vmem>>, vector<16x128xbf16>,
    return
  }
  func.func @transform_0(%arg0: i32) -> (i32, i32) {
    %c0_i32 = arith.constant 0 : i32
    %c0_i32_0 = arith.constant 0 : i32
    return %arg0, %c0_i32 : i32, i32
  }
  func.func @transform_1(%arg0: i32) -> (i32, i32) {
    %c0_i32 = arith.constant 0 : i32
    %c0_i32_0 = arith.constant 0 : i32
    %c0_i32_1 = arith.constant 0 : i32
    return %c0_i32, %c0_i32_0 : i32, i32
  }
  func.func @transform_2(%arg0: i32) -> (i32, i32) {
    %c0_i32 = arith.constant 0 : i32
    %c0_i32_0 = arith.constant 0 : i32
    %c0_i32_1 = arith.constant 0 : i32
    return %c0_i32, %c0_i32_0 : i32, i32
  }
  func.func @transform_3(%arg0: i32) -> (i32, i32) {
    %c0_i32 = arith.constant 0 : i32
    %c0_i32_0 = arith.constant 0 : i32
    %c0_i32_1 = arith.constant 0 : i32
    return %c0_i32, %c0_i32_0 : i32, i32
  }
  func.func @transform_4(%arg0: i32) -> (i32, i32) {
    %c0_i32 = arith.constant 0 : i32
    %c0_i32_0 = arith.constant 0 : i32
    %c0_i32_1 = arith.constant 0 : i32
    return %c0_i32, %c0_i32_0 : i32, i32
  }
  func.func @transform_5(%arg0: i32) -> (i32, i32) {
    %c0_i32 = arith.constant 0 : i32
    %c0_i32_0 = arith.constant 0 : i32
    return %arg0, %c0_i32 : i32, i32
  }
  func.func @transform_6(%arg0: i32) -> (i32, i32) {
    %c0_i32 = arith.constant 0 : i32
    %c0_i32_0 = arith.constant 0 : i32
    return %arg0, %c0_i32 : i32, i32
  }
}

</mosaic_0001>

<llo_original>
// kernel: tpu_custom_call.1
$region0: #{tpu_custom_call.1}
  #allocation0 [shape = 'u32[]', space=smem, size = 0x4, offset = 0x4, fixed_abs, tag = 'smem constant byte address 0x4 - core index']
  #allocation1 [shape = 'u32[144,128]{1,0:T(1,128)}', space=vmem, size = 0x12000, scoped, tag = 'internal scratch']
  %s0 = inlined_call_operand.hbm [shape: f32[16,128], index: 0, kind: input, shape index: {}]
  %s1 = inlined_call_operand.vmem [shape: f32[1,128], index: 1, kind: input, shape index: {}]
  %s2 = inlined_call_operand.vmem [shape: f32[1,128], index: 2, kind: input, shape index: {}]
  %s3 = inlined_call_operand.vmem [shape: f32[1,128], index: 3, kind: input, shape index: {}]
  %s4 = inlined_call_operand.vmem [shape: f32[1,128], index: 4, kind: input, shape index: {}]
  %s5 = inlined_call_operand.hbm [shape: f32[16,128], index: 5, kind: output, shape index: {0}]
  %s6 = inlined_call_operand.hbm [shape: bf16[16,128], index: 6, kind: output, shape index: {1}]
  %7 = xla_tuple %s5, %s6
  %s8 = sld [smem:[#allocation0]]
  $region42: #{tpu_custom_call.1} parent=0
    _
  %s10 = ssub.s32 1, %s8
  %s11 = scalar_select 0, %s10, %s8
  $region1: #{tpu_custom_call.1} parent=0
    #allocation2 [shape = 'u8[8192]{0}', space=vmem, size = 0x2000, scoped, tag = 'input window, operand 0, single buffered']
    #allocation3 [shape = 's32[1]{0}', space=sflag, size = 0x4, scoped, tag = 'scoped memory for tpu_custom_call.1']
    #allocation4 [shape = 's32[1]{0}', space=sflag, size = 0x4, scoped, tag = 'scoped memory for tpu_custom_call.1']
    #allocation5 [shape = 'u8[8192]{0}', space=vmem, size = 0x2000, scoped, tag = 'output window, operand 0, single buffered']
    #allocation6 [shape = 'u8[4096]{0}', space=vmem, size = 0x1000, scoped, tag = 'output window, operand 1, single buffered']
    #allocation7 [shape = 's32[1]{0}', space=sflag, size = 0x4, scoped, tag = 'scoped memory for tpu_custom_call.1']
    %12 = vsyncpa [#allocation3], 0
    %13 = vsyncpa [#allocation4], 0
    %14 = vsyncpa [#allocation7], 0
    // Predicated region
    $region2: #{tpu_custom_call.1} parent=1 // pred_check
      _
    $region3: #{tpu_custom_call.1} parent=1 // pred_check_branch
      %16 = sbr.rel (0) target = $region5
    $region4: #{tpu_custom_call.1} parent=1 // pred_region
      %s18 = ssub.s32 256, 256
      %19 = vsyncadd [#allocation3], %s18
      %s20 = sshll.u32 [#allocation2], 4
      %s21 = int_to_ptr.vmem [resolvable:$true] %s20
      %26 = dma.hbm_to_vmem [thread:$0]  %s0, 256, %s21, [#allocation3], 128, 128, 8
    $region5: #{tpu_custom_call.1} parent=1 // pred_fallthru
      _
    // Predicated region
    $region6: #{tpu_custom_call.1} parent=1 // pred_check
      _
    $region7: #{tpu_custom_call.1} parent=1 // pred_check_branch
      %28 = sbr.rel (0) target = $region9
    $region8: #{tpu_custom_call.1} parent=1 // pred_region
      _
    $region9: #{tpu_custom_call.1} parent=1 // pred_fallthru
      _
    // Predicated region
    $region10: #{tpu_custom_call.1} parent=1 // pred_check
      _
    $region11: #{tpu_custom_call.1} parent=1 // pred_check_branch
      %30 = sbr.rel (0) target = $region13
    $region12: #{tpu_custom_call.1} parent=1 // pred_region
      _
    $region13: #{tpu_custom_call.1} parent=1 // pred_fallthru
      _
    // Predicated region
    $region14: #{tpu_custom_call.1} parent=1 // pred_check
      _
    $region15: #{tpu_custom_call.1} parent=1 // pred_check_branch
      %32 = sbr.rel (0) target = $region17
    $region16: #{tpu_custom_call.1} parent=1 // pred_region
      _
    $region17: #{tpu_custom_call.1} parent=1 // pred_fallthru
      _
    // Predicated region
    $region18: #{tpu_custom_call.1} parent=1 // pred_check
      _
    $region19: #{tpu_custom_call.1} parent=1 // pred_check_branch
      %34 = sbr.rel (0) target = $region21
    $region20: #{tpu_custom_call.1} parent=1 // pred_region
      _
    $region21: #{tpu_custom_call.1} parent=1 // pred_fallthru
      _
    // Predicated region
    $region22: #{tpu_custom_call.1} parent=1 // pred_check
      _
    $region23: #{tpu_custom_call.1} parent=1 // pred_check_branch
      %36 = sbr.rel (0) target = $region25
    $region24: #{tpu_custom_call.1} parent=1 // pred_region
      %37 = dma.done [#allocation3], 256
    $region25: #{tpu_custom_call.1} parent=1 // pred_fallthru
      _
    %v38 = vld [vmem:[#allocation2] sm:$0xff]
    %v39 = vld [vmem:[#allocation2 + $0x8] sm:$0xff]
    %v40 = vld [vmem:[%s1] sm:$0x1]
    %v41 = vld [vmem:[%s2] sm:$0x1]
    %42 = vadd.xlane.f32.xlu0 %v38
    %v43 = vpop.xlane.xlu0 %42
    %44 = vadd.xlane.f32.xlu0 %v39
    %v45 = vpop.xlane.xlu0 %44
    %v46 = vrcp.pop 128.0
    %v47 = vmul.f32 %v43, %v46
    %v48 = vmul.f32 %v45, %v46
    %v49 = vsub.f32 %v38, %v47
    %v50 = vsub.f32 %v39, %v48
    %v51 = vmul.f32 %v49, %v49
    %v52 = vmul.f32 %v50, %v50
    %53 = vadd.xlane.f32.xlu0 %v51
    %v54 = vpop.xlane.xlu0 %53
    %55 = vadd.xlane.f32.xlu0 %v52
    %v56 = vpop.xlane.xlu0 %55
    %v57 = vmul.f32 %v54, %v46
    %v58 = vmul.f32 %v56, %v46
    %v59 = vadd.f32 %v57, 1e-05
    %v60 = vadd.f32 %v58, 1e-05
    %v61 = vrsqrt.pop %v59
    %v62 = vrsqrt.pop %v60
    %v63 = vmul.f32 %v49, %v61
    %v64 = vmul.f32 %v50, %v62
    %v66 = vlaneseq
    %v67 = vshrl.u32 %v66, 7
    %v68 = vsub.s32 0, %v67
    %v69 = vrot.slane %v40, %v68
    %v71 = vmul.f32 %v63, %v69
    %v72 = vmul.f32 %v64, %v69
    %v74 = vlaneseq
    %v75 = vshrl.u32 %v74, 7
    %v76 = vsub.s32 0, %v75
    %v77 = vrot.slane %v41, %v76
    %v79 = vadd.f32 %v71, %v77
    %v80 = vadd.f32 %v72, %v77
    %v81 = vadd.f32 %v38, %v79
    %v82 = vadd.f32 %v39, %v80
    %83 = vst [vmem:[#allocation5] sm:$0xff] %v81
    %84 = vst [vmem:[#allocation5 + $0x8] sm:$0xff] %v82
    %v85 = vld [vmem:[%s3] sm:$0x1]
    %v86 = vld [vmem:[%s4] sm:$0x1]
    %87 = vadd.xlane.f32.xlu0 %v81
    %v88 = vpop.xlane.xlu0 %87
    %89 = vadd.xlane.f32.xlu0 %v82
    %v90 = vpop.xlane.xlu0 %89
    %v91 = vmul.f32 %v88, %v46
    %v92 = vmul.f32 %v90, %v46
    %v93 = vsub.f32 %v81, %v91
    %v94 = vsub.f32 %v82, %v92
    %v95 = vmul.f32 %v93, %v93
    %v96 = vmul.f32 %v94, %v94
    %97 = vadd.xlane.f32.xlu0 %v95
    %v98 = vpop.xlane.xlu0 %97
    %99 = vadd.xlane.f32.xlu0 %v96
    %v100 = vpop.xlane.xlu0 %99
    %v101 = vmul.f32 %v98, %v46
    %v102 = vmul.f32 %v100, %v46
    %v103 = vadd.f32 %v101, 1e-05
    %v104 = vadd.f32 %v102, 1e-05
    %v105 = vrsqrt.pop %v103
    %v106 = vrsqrt.pop %v104
    %v107 = vmul.f32 %v93, %v105
    %v108 = vmul.f32 %v94, %v106
    %v110 = vlaneseq
    %v111 = vshrl.u32 %v110, 7
    %v112 = vsub.s32 0, %v111
    %v113 = vrot.slane %v85, %v112
    %v115 = vmul.f32 %v107, %v113
    %v116 = vmul.f32 %v108, %v113
    %v118 = vlaneseq
    %v119 = vshrl.u32 %v118, 7
    %v120 = vsub.s32 0, %v119
    %v121 = vrot.slane %v86, %v120
    %v123 = vadd.f32 %v115, %v121
    %v124 = vadd.f32 %v116, %v121
    %v125 = vpack.c.bf16 %v124, %v123
    %v127 = vunpack.c.l.b16 %v125
    %v128 = vunpack.c.h.b16 %v125
    %v129 = vpack.c.b16 %v127, %v127
    %v130 = vpack.c.b16 %v128, %v128
    %133 = vst [vmem:[#allocation6] sm:$0xf] %v129
    %134 = vst [vmem:[#allocation6 + $0x4] sm:$0xf] %v130
    // Predicated region
    $region26: #{tpu_custom_call.1} parent=1 // pred_check
      _
    $region27: #{tpu_custom_call.1} parent=1 // pred_check_branch
      %136 = sbr.rel (0) target = $region29
    $region28: #{tpu_custom_call.1} parent=1 // pred_region
      %s138 = ssub.s32 256, 256
      %139 = vsyncadd [#allocation4], %s138
      %s140 = sshll.u32 [#allocation5], 4
      %s141 = int_to_ptr.vmem [resolvable:$true] %s140
      %146 = dma.vmem_to_hbm [thread:$0]  %s141, 256, %s5, [#allocation4], 128, 128, 8
    $region29: #{tpu_custom_call.1} parent=1 // pred_fallthru
      _
    // Predicated region
    $region30: #{tpu_custom_call.1} parent=1 // pred_check
      _
    $region31: #{tpu_custom_call.1} parent=1 // pred_check_branch
      %148 = sbr.rel (0) target = $region33
    $region32: #{tpu_custom_call.1} parent=1 // pred_region
      %s150 = ssub.s32 128, 128
      %151 = vsyncadd [#allocation7], %s150
      %s152 = sshll.u32 [#allocation6], 4
      %s153 = int_to_ptr.vmem [resolvable:$true] %s152
      %158 = dma.vmem_to_hbm [thread:$0]  %s153, 128, %s6, [#allocation7], 64, 64, 4
    $region33: #{tpu_custom_call.1} parent=1 // pred_fallthru
      _
    // Predicated region
    $region34: #{tpu_custom_call.1} parent=1 // pred_check
      _
    $region35: #{tpu_custom_call.1} parent=1 // pred_check_branch
      %160 = sbr.rel (0) target = $region37
    $region36: #{tpu_custom_call.1} parent=1 // pred_region
      %161 = dma.done [#allocation4], 256
    $region37: #{tpu_custom_call.1} parent=1 // pred_fallthru
      _
    // Predicated region
    $region38: #{tpu_custom_call.1} parent=1 // pred_check
      _
    $region39: #{tpu_custom_call.1} parent=1 // pred_check_branch
      %163 = sbr.rel (0) target = $region41
    $region40: #{tpu_custom_call.1} parent=1 // pred_region
      %164 = dma.done [#allocation7], 128
    $region41: #{tpu_custom_call.1} parent=1 // pred_fallthru
      _
    %165 = vsyncpa [#allocation3], 1
    %166 = vsyncpa [#allocation4], 1
    %167 = vsyncpa [#allocation7], 1

</llo_original>
